<compile_context>
chip_gen: v6e
topology: v6e:2x2x1
jax: 0.10.0
libtpu: 0.0.40
codegen_flags: <defaults>
</compile_context>

<pallas_src>
import functools

import jax
import jax.numpy as jnp
from jax.experimental import pallas as pl
from jax.experimental.pallas import tpu as pltpu

# ----- synthetic module configuration -------------------------------------
SPLIT = 64        # split size along dim=1 (each half has SPLIT features)
H_LEFT = 64       # output features of the `left` Linear
H_RIGHT = 64      # output features of the `right` Linear
BATCH = 256       # batch size (multiple of 8)

K_DIM = 2 * SPLIT            # 128 -> lane-dense input feature axis
OUT_DIM = H_LEFT + H_RIGHT   # 128 -> lane-dense output feature axis


# --------------------------------------------------------------------------
# kernel
# --------------------------------------------------------------------------
def _ycomb_kernel(x_ref, w_ref, b_ref, o_ref):
    """One batch tile of the fused (block-diagonal) YComb linear.

    x_ref : (tb, K)    VMEM f32   (current batch tile)
    w_ref : (K, OUT)   VMEM bf16  (block-diag of Wl, Wr; resident, single-buffered)
    b_ref : (1, OUT)   VMEM f32   (concat of bl, br; resident, single-buffered)
    o_ref : (tb, OUT)  VMEM f32
    """
    x_bf16 = x_ref[...].astype(jnp.bfloat16)          # bf16 operands to the MXU
    y = jnp.dot(x_bf16, w_ref[...], preferred_element_type=jnp.float32)
    o_ref[...] = (y + b_ref[...]).astype(o_ref.dtype)  # bias add at f32 accum precision


# --------------------------------------------------------------------------
# "module init": fold split -> two Linears -> concat into ONE block-diag matmul
# --------------------------------------------------------------------------
def build_fused_params(w_left, b_left, w_right, b_right, mxu_dtype=jnp.bfloat16):
    """Precompute block-diagonal weight and concatenated bias (run once).

    [xl xr] @ [[Wl 0],[0 Wr]] + [bl br]  ==  concat(xl@Wl + bl, xr@Wr + br)
    Built in the weights' dtype first, then cast to the MXU dtype (bf16).
    """
    split, h_left = w_left.shape
    h_right = w_right.shape[1]
    out_dim = h_left + h_right
    param_dtype = jnp.result_type(w_left.dtype, w_right.dtype)

    w_block = jnp.zeros((2 * split, out_dim), dtype=param_dtype)
    w_block = w_block.at[:split, :h_left].set(w_left)
    w_block = w_block.at[split:, h_left:].set(w_right)
    w_block = w_block.astype(mxu_dtype)

    # Bias kept in f32: it is added after the f32 accumulation and is only
    # 4*OUT bytes, so there is no DMA benefit to narrowing it.
    b_cat = jnp.concatenate(
        [b_left.reshape(1, h_left), b_right.reshape(1, h_right)], axis=1
    ).astype(jnp.float32)
    return w_block, b_cat


# --------------------------------------------------------------------------
# generation-aware tiling
# --------------------------------------------------------------------------
def _num_tensorcores_per_chip():
    """2 TensorCores per chip on v7x, otherwise 1 (v5e/v6e)."""
    try:
        kind = jax.devices()[0].device_kind.lower()
    except Exception:
        return 1
    return 2 if "7" in kind else 1


def _pick_batch_tile(batch, num_tc):
    """Single step per TensorCore: tb=B on 1-TC chips, tb=B/2 on v7x."""
    if num_tc >= 2 and batch % 2 == 0 and (batch // 2) % 8 == 0:
        return batch // 2
    return batch
    # TODO(synk): ragged batches (B not a multiple of 8 / of the tile) would
    # need a padded tail tile + masked store; not required for this config.


# --------------------------------------------------------------------------
# forward
# --------------------------------------------------------------------------
@functools.partial(jax.jit, static_argnames=("tb",))
def ycomb_forward(x, w_block, b_cat, *, tb):
    """YComb(Linear, Linear) forward via a single block-diagonal matmul."""
    B, K = x.shape
    K_w, OUT = w_block.shape
    assert K == K_w, "input feature dim must equal 2*split"
    assert B % tb == 0, "batch must be a multiple of the batch tile"

    grid = (B // tb,)

    flops = 2 * B * K * OUT
    bytes_accessed = (
        B * K * x.dtype.itemsize            # x in
        + K * OUT * w_block.dtype.itemsize  # weights in (bf16)
        + OUT * b_cat.dtype.itemsize        # bias in
        + B * OUT * x.dtype.itemsize        # out
    )

    return pl.pallas_call(
        _ycomb_kernel,
        out_shape=jax.ShapeDtypeStruct((B, OUT), x.dtype),
        grid_spec=pl.GridSpec(
            grid=grid,
            in_specs=[
                # x batch tile (pipelined across the grid)
                pl.BlockSpec((tb, K), lambda i: (i, 0)),
                # weights / bias: constant index_map -> VMEM-resident, single buffer
                pl.BlockSpec((K, OUT), lambda i: (0, 0),
                             pipeline_mode=pl.Buffered(1)),
                pl.BlockSpec((1, OUT), lambda i: (0, 0),
                             pipeline_mode=pl.Buffered(1)),
            ],
            out_specs=pl.BlockSpec((tb, OUT), lambda i: (i, 0)),
        ),
        compiler_params=pltpu.CompilerParams(
            dimension_semantics=("parallel",),   # shards batch tiles across TCs on v7x
        ),
        cost_estimate=pl.CostEstimate(
            flops=flops, transcendentals=0, bytes_accessed=bytes_accessed),
    )(x, w_block, b_cat)


# --------------------------------------------------------------------------
# reference
# --------------------------------------------------------------------------
def ycomb_reference(x, w_left, b_left, w_right, b_right):
    split = w_left.shape[0]
    xl, xr = x[:, :split], x[:, split:]
    return jnp.concatenate([xl @ w_left + b_left, xr @ w_right + b_right], axis=1)


if __name__ == "__main__":
    key = jax.random.PRNGKey(0)
    kx, kwl, kbl, kwr, kbr = jax.random.split(key, 5)

    # deterministic synthetic parameters (nn.Linear-shaped, stored as (in, out))
    x = jax.random.normal(kx, (BATCH, 2 * SPLIT), dtype=jnp.float32)
    w_left = jax.random.normal(kwl, (SPLIT, H_LEFT), dtype=jnp.float32) * 0.1
    b_left = jax.random.normal(kbl, (1, H_LEFT), dtype=jnp.float32) * 0.1
    w_right = jax.random.normal(kwr, (SPLIT, H_RIGHT), dtype=jnp.float32) * 0.1
    b_right = jax.random.normal(kbr, (1, H_RIGHT), dtype=jnp.float32) * 0.1

    # --- module init (runs once, outside the per-call jit path) ------------
    w_block, b_cat = build_fused_params(w_left, b_left, w_right, b_right)
    w_block, b_cat = jax.block_until_ready((w_block, b_cat))

    # --- generation-aware grid: 1 step on v5e/v6e, 2 parallel steps on v7x --
    num_tc = _num_tensorcores_per_chip()
    tb = _pick_batch_tile(BATCH, num_tc)

    out = ycomb_forward(x, w_block, b_cat, tb=tb)
    out = jax.block_until_ready(out)

    # Tight check vs. the same bf16-operand / f32-accumulation computation.
    ref_bf16 = jnp.dot(x.astype(jnp.bfloat16), w_block,
                       preferred_element_type=jnp.float32) + b_cat
    assert out.shape == (BATCH, H_LEFT + H_RIGHT)
    assert jnp.allclose(out, ref_bf16, atol=1e-3, rtol=1e-3)

    # Module-semantics check vs. the full-precision reference (bf16 MXU operands
    # -> compare at bf16-appropriate tolerance).
    ref = ycomb_reference(x, w_left, b_left, w_right, b_right)
    assert jnp.allclose(out, ref, atol=3e-2, rtol=3e-2)

    print("KERNEL_OK")
</pallas_src>

<mosaic_0001>
module attributes {stable_mosaic.version = 11 : i64} {
  func.func @_ycomb_kernel(%arg0: i32, %arg1: memref<256x128xf32, #tpu.memory_space<vmem>>, %arg2: memref<128x128xbf16, #tpu.memory_space<vmem>>, %arg3: memref<1x128xf32, #tpu.memory_space<vmem>>, %arg4: memref<256x128xf32, #tpu.memory_space<vmem>>) attributes {dimension_semantics = [#tpu.dimension_semantics<parallel>], iteration_bounds = array<i64: 1>, scalar_prefetch = 0 : i64, scratch_operands = 0 : i64, tpu.core_type = #tpu.core_type<tc>, window_params = [{transform_indices = @transform_0, window_bounds = array<i64: 256, 128>}, {pipeline_mode = #tpu.pipeline_mode<synchronous>, transform_indices = @transform_1, window_bounds = array<i64: 128, 128>}, {pipeline_mode = #tpu.pipeline_mode<synchronous>, transform_indices = @transform_2, window_bounds = array<i64: 1, 128>}, {transform_indices = @transform_3, window_bounds = array<i64: 256, 128>}]} {
    %c0 = arith.constant 0 : index
    %c0_0 = arith.constant 0 : index
    %0 = vector.load %arg1[%c0, %c0_0] : memref<256x128xf32, #tpu.memory_space<vmem>>, vector<256x128xf32>
    %1 = arith.truncf %0 : vector<256x128xf32> to vector<256x128xbf16>
    %c0_1 = arith.constant 0 : index
    %c0_2 = arith.constant 0 : index
    %2 = vector.load %arg2[%c0_1, %c0_2] : memref<128x128xbf16, #tpu.memory_space<vmem>>, vector<128x128xbf16>
    %cst = arith.constant dense<0.000000e+00> : vector<256x128xf32>
    %3 = tpu.matmul %1, %2, %cst {dimension_numbers = #tpu.dot_dimension_numbers<[1], [0], [0], [1], [0, 0, 1, 1], [], []>} : vector<256x128xbf16>, vector<128x128xbf16>, vector<256x128xf32> -> vector<256x128xf32>
    %c0_3 = arith.constant 0 : index
    %c0_4 = arith.constant 0 : index
    %4 = vector.load %arg3[%c0_3, %c0_4] : memref<1x128xf32, #tpu.memory_space<vmem>>, vector<1x128xf32>
    %5 = vector.broadcast %4 : vector<1x128xf32> to vector<256x128xf32>
    %6 = arith.addf %3, %5 : vector<256x128xf32>
    %c0_5 = arith.constant 0 : index
    %c0_6 = arith.constant 0 : index
    %7 = vector.load %arg4[%c0_5, %c0_6] : memref<256x128xf32, #tpu.memory_space<vmem>>, vector<256x128xf32>
    tpu.vector_store %arg4[%c0_5, %c0_6], %6 {strides = array<i32>} : memref<256x128xf32, #tpu.memory_space<vmem>>, vector<256x128xf32>,
    return
  }
  func.func @transform_0(%arg0: i32) -> (i32, i32) {
    %c0_i32 = arith.constant 0 : i32
    %c0_i32_0 = arith.constant 0 : i32
    return %arg0, %c0_i32 : i32, i32
  }
  func.func @transform_1(%arg0: i32) -> (i32, i32) {
    %c0_i32 = arith.constant 0 : i32
    %c0_i32_0 = arith.constant 0 : i32
    %c0_i32_1 = arith.constant 0 : i32
    return %c0_i32, %c0_i32_0 : i32, i32
  }
  func.func @transform_2(%arg0: i32) -> (i32, i32) {
    %c0_i32 = arith.constant 0 : i32
    %c0_i32_0 = arith.constant 0 : i32
    %c0_i32_1 = arith.constant 0 : i32
    return %c0_i32, %c0_i32_0 : i32, i32
  }
  func.func @transform_3(%arg0: i32) -> (i32, i32) {
    %c0_i32 = arith.constant 0 : i32
    %c0_i32_0 = arith.constant 0 : i32
    return %arg0, %c0_i32 : i32, i32
  }
}

</mosaic_0001>

<llo_original>
// kernel: ycomb_forward.1
$region0: #{ycomb_forward.1}
  #allocation0 [shape = 'u32[]', space=smem, size = 0x4, offset = 0x4, fixed_abs, tag = 'smem constant byte address 0x4 - core index']
  #allocation1 [shape = 'u32[144,128]{1,0:T(1,128)}', space=vmem, size = 0x12000, scoped, tag = 'internal scratch']
  %s0 = inlined_call_operand.hbm [shape: f32[256,128], index: 0, kind: input, shape index: {}]
  %s1 = inlined_call_operand.hbm [shape: bf16[128,128], index: 1, kind: input, shape index: {}]
  %s2 = inlined_call_operand.vmem [shape: f32[1,128], index: 2, kind: input, shape index: {}]
  %s3 = inlined_call_operand.hbm [shape: f32[256,128], index: 3, kind: output, shape index: {}]
  %s4 = sld [smem:[#allocation0]]
  $region30: #{ycomb_forward.1} parent=0
    _
  %s6 = ssub.s32 1, %s4
  %s7 = scalar_select 0, %s6, %s4
  $region1: #{ycomb_forward.1} parent=0
    #allocation2 [shape = 'u8[131072]{0}', space=vmem, size = 0x20000, scoped, tag = 'input window, operand 0, single buffered']
    #allocation3 [shape = 's32[1]{0}', space=sflag, size = 0x4, scoped, tag = 'scoped memory for ycomb_forward.1']
    #allocation4 [shape = 's32[1]{0}', space=sflag, size = 0x4, scoped, tag = 'scoped memory for ycomb_forward.1']
    #allocation5 [shape = 'u8[32768]{0}', space=vmem, size = 0x8000, scoped, tag = 'input window, operand 1, single buffered']
    #allocation6 [shape = 's32[1]{0}', space=sflag, size = 0x4, scoped, tag = 'scoped memory for ycomb_forward.1']
    #allocation7 [shape = 'u8[131072]{0}', space=vmem, size = 0x20000, scoped, tag = 'output window, operand 0, single buffered']
    %8 = vsyncpa [#allocation3], 0
    %9 = vsyncpa [#allocation6], 0
    %10 = vsyncpa [#allocation4], 0
    // Predicated region
    $region2: #{ycomb_forward.1} parent=1 // pred_check
      _
    $region3: #{ycomb_forward.1} parent=1 // pred_check_branch
      %12 = sbr.rel (0) target = $region5
    $region4: #{ycomb_forward.1} parent=1 // pred_region
      %s14 = ssub.s32 4096, 4096
      %15 = vsyncadd [#allocation3], %s14
      %s16 = sshll.u32 [#allocation2], 4
      %s17 = int_to_ptr.vmem [resolvable:$true] %s16
      %22 = dma.hbm_to_vmem [thread:$0]  %s0, 4096, %s17, [#allocation3], 128, 128, 8
    $region5: #{ycomb_forward.1} parent=1 // pred_fallthru
      _
    // Predicated region
    $region6: #{ycomb_forward.1} parent=1 // pred_check
      _
    $region7: #{ycomb_forward.1} parent=1 // pred_check_branch
      %24 = sbr.rel (0) target = $region9
    $region8: #{ycomb_forward.1} parent=1 // pred_region
      %s26 = ssub.s32 1024, 1024
      %27 = vsyncadd [#allocation6], %s26
      %s28 = sshll.u32 [#allocation5], 4
      %s29 = int_to_ptr.vmem [resolvable:$true] %s28
      %34 = dma.hbm_to_vmem [thread:$0]  %s1, 1024, %s29, [#allocation6], 64, 64, 4
    $region9: #{ycomb_forward.1} parent=1 // pred_fallthru
      _
    // Predicated region
    $region10: #{ycomb_forward.1} parent=1 // pred_check
      _
    $region11: #{ycomb_forward.1} parent=1 // pred_check_branch
      %36 = sbr.rel (0) target = $region13
    $region12: #{ycomb_forward.1} parent=1 // pred_region
      _
    $region13: #{ycomb_forward.1} parent=1 // pred_fallthru
      _
    // Predicated region
    $region14: #{ycomb_forward.1} parent=1 // pred_check
      _
    $region15: #{ycomb_forward.1} parent=1 // pred_check_branch
      %38 = sbr.rel (0) target = $region17
    $region16: #{ycomb_forward.1} parent=1 // pred_region
      %39 = dma.done [#allocation3], 4096
    $region17: #{ycomb_forward.1} parent=1 // pred_fallthru
      _
    // Predicated region
    $region18: #{ycomb_forward.1} parent=1 // pred_check
      _
    $region19: #{ycomb_forward.1} parent=1 // pred_check_branch
      %41 = sbr.rel (0) target = $region21
    $region20: #{ycomb_forward.1} parent=1 // pred_region
      %42 = dma.done [#allocation6], 1024
    $region21: #{ycomb_forward.1} parent=1 // pred_fallthru
      _
    %v44 = vld [vmem:[#allocation2] sm:$0xff]
    %v45 = vld [vmem:[#allocation2 + $0x8] sm:$0xff]
    %v46 = vld [vmem:[#allocation2 + $0x10] sm:$0xff]
    %v47 = vld [vmem:[#allocation2 + $0x18] sm:$0xff]
    %v48 = vld [vmem:[#allocation2 + $0x20] sm:$0xff]
    %v49 = vld [vmem:[#allocation2 + $0x28] sm:$0xff]
    %v50 = vld [vmem:[#allocation2 + $0x30] sm:$0xff]
    %v51 = vld [vmem:[#allocation2 + $0x38] sm:$0xff]
    %v52 = vld [vmem:[#allocation2 + $0x40] sm:$0xff]
    %v53 = vld [vmem:[#allocation2 + $0x48] sm:$0xff]
    %v54 = vld [vmem:[#allocation2 + $0x50] sm:$0xff]
    %v55 = vld [vmem:[#allocation2 + $0x58] sm:$0xff]
    %v56 = vld [vmem:[#allocation2 + $0x60] sm:$0xff]
    %v57 = vld [vmem:[#allocation2 + $0x68] sm:$0xff]
    %v58 = vld [vmem:[#allocation2 + $0x70] sm:$0xff]
    %v59 = vld [vmem:[#allocation2 + $0x78] sm:$0xff]
    %v60 = vld [vmem:[#allocation2 + $0x80] sm:$0xff]
    %v61 = vld [vmem:[#allocation2 + $0x88] sm:$0xff]
    %v62 = vld [vmem:[#allocation2 + $0x90] sm:$0xff]
    %v63 = vld [vmem:[#allocation2 + $0x98] sm:$0xff]
    %v64 = vld [vmem:[#allocation2 + $0xa0] sm:$0xff]
    %v65 = vld [vmem:[#allocation2 + $0xa8] sm:$0xff]
    %v66 = vld [vmem:[#allocation2 + $0xb0] sm:$0xff]
    %v67 = vld [vmem:[#allocation2 + $0xb8] sm:$0xff]
    %v68 = vld [vmem:[#allocation2 + $0xc0] sm:$0xff]
    %v69 = vld [vmem:[#allocation2 + $0xc8] sm:$0xff]
    %v70 = vld [vmem:[#allocation2 + $0xd0] sm:$0xff]
    %v71 = vld [vmem:[#allocation2 + $0xd8] sm:$0xff]
    %v72 = vld [vmem:[#allocation2 + $0xe0] sm:$0xff]
    %v73 = vld [vmem:[#allocation2 + $0xe8] sm:$0xff]
    %v74 = vld [vmem:[#allocation2 + $0xf0] sm:$0xff]
    %v75 = vld [vmem:[#allocation2 + $0xf8] sm:$0xff]
    %v76 = vpack.c.bf16 %v45, %v44
    %v77 = vpack.c.bf16 %v47, %v46
    %v78 = vpack.c.bf16 %v49, %v48
    %v79 = vpack.c.bf16 %v51, %v50
    %v80 = vpack.c.bf16 %v53, %v52
    %v81 = vpack.c.bf16 %v55, %v54
    %v82 = vpack.c.bf16 %v57, %v56
    %v83 = vpack.c.bf16 %v59, %v58
    %v84 = vpack.c.bf16 %v61, %v60
    %v85 = vpack.c.bf16 %v63, %v62
    %v86 = vpack.c.bf16 %v65, %v64
    %v87 = vpack.c.bf16 %v67, %v66
    %v88 = vpack.c.bf16 %v69, %v68
    %v89 = vpack.c.bf16 %v71, %v70
    %v90 = vpack.c.bf16 %v73, %v72
    %v91 = vpack.c.bf16 %v75, %v74
    %v92 = vld [vmem:[#allocation5] sm:$0xf]
    %v93 = vld [vmem:[#allocation5 + $0x4] sm:$0xf]
    %v94 = vld [vmem:[#allocation5 + $0x8] sm:$0xf]
    %v95 = vld [vmem:[#allocation5 + $0xc] sm:$0xf]
    %v96 = vld [vmem:[#allocation5 + $0x10] sm:$0xf]
    %v97 = vld [vmem:[#allocation5 + $0x14] sm:$0xf]
    %v98 = vld [vmem:[#allocation5 + $0x18] sm:$0xf]
    %v99 = vld [vmem:[#allocation5 + $0x1c] sm:$0xf]
    %v100 = vld [vmem:[#allocation5 + $0x20] sm:$0xf]
    %v101 = vld [vmem:[#allocation5 + $0x24] sm:$0xf]
    %v102 = vld [vmem:[#allocation5 + $0x28] sm:$0xf]
    %v103 = vld [vmem:[#allocation5 + $0x2c] sm:$0xf]
    %v104 = vld [vmem:[#allocation5 + $0x30] sm:$0xf]
    %v105 = vld [vmem:[#allocation5 + $0x34] sm:$0xf]
    %v106 = vld [vmem:[#allocation5 + $0x38] sm:$0xf]
    %v107 = vld [vmem:[#allocation5 + $0x3c] sm:$0xf]
    %v108 = vld [vmem:[%s2] sm:$0x1]
    %v110 = vlaneseq
    %v111 = vshrl.u32 %v110, 7
    %v112 = vsub.s32 0, %v111
    %v113 = vrot.slane %v108, %v112
    %v131 = vunpack.c.l.b16 %v92
    %v132 = vunpack.c.l.b16 %v93
    %v133 = vunpack.c.l.b16 %v94
    %v134 = vunpack.c.l.b16 %v95
    %v135 = vunpack.c.l.b16 %v96
    %v136 = vunpack.c.l.b16 %v97
    %v137 = vunpack.c.l.b16 %v98
    %v138 = vunpack.c.l.b16 %v99
    %v139 = vunpack.c.l.b16 %v100
    %v140 = vunpack.c.l.b16 %v101
    %v141 = vunpack.c.l.b16 %v102
    %v142 = vunpack.c.l.b16 %v103
    %v143 = vunpack.c.l.b16 %v104
    %v144 = vunpack.c.l.b16 %v105
    %v145 = vunpack.c.l.b16 %v106
    %v146 = vunpack.c.l.b16 %v107
    %v147 = vpack.c.b16 %v132, %v131
    %v148 = vpack.c.b16 %v134, %v133
    %v149 = vpack.c.b16 %v136, %v135
    %v150 = vpack.c.b16 %v138, %v137
    %v151 = vpack.c.b16 %v140, %v139
    %v152 = vpack.c.b16 %v142, %v141
    %v153 = vpack.c.b16 %v144, %v143
    %v154 = vpack.c.b16 %v146, %v145
    %163 = vmatprep.subr.bf16.mxu0 0
    %164 = vmatpush1.bf16.msra.mxu0 %v154
    %165 = vmatprep.subr.bf16.mxu0 0
    %166 = vmatpush1.bf16.msra.mxu0 %v153
    %167 = vmatprep.subr.bf16.mxu0 0
    %168 = vmatpush1.bf16.msra.mxu0 %v152
    %169 = vmatprep.subr.bf16.mxu0 0
    %170 = vmatpush1.bf16.msra.mxu0 %v151
    %171 = vmatprep.subr.bf16.mxu0 0
    %172 = vmatpush1.bf16.msra.mxu0 %v150
    %173 = vmatprep.subr.bf16.mxu0 0
    %174 = vmatpush1.bf16.msra.mxu0 %v149
    %175 = vmatprep.subr.bf16.mxu0 0
    %176 = vmatpush1.bf16.msra.mxu0 %v148
    %177 = vmatprep.subr.bf16.mxu0 0
    %178 = vmatpush1.bf16.msra.mxu0 %v147
    %179 = vmatprep.subr.bf16.mxu0 0
    %180 = vmatpush2.bf16.msra.mxu0 0
    %181 = vmatprep.subr.bf16.mxu0 0
    %182 = vmatpush2.bf16.msra.mxu0 0
    %183 = vmatprep.subr.bf16.mxu0 0
    %184 = vmatpush2.bf16.msra.mxu0 0
    %185 = vmatprep.subr.bf16.mxu0 0
    %186 = vmatpush2.bf16.msra.mxu0 0
    %187 = vmatprep.subr.bf16.mxu0 0
    %188 = vmatpush2.bf16.msra.mxu0 0
    %189 = vmatprep.subr.bf16.mxu0 0
    %190 = vmatpush2.bf16.msra.mxu0 0
    %191 = vmatprep.subr.bf16.mxu0 0
    %192 = vmatpush2.bf16.msra.mxu0 0
    %193 = vmatprep.subr.bf16.mxu0 0
    %194 = vmatpush2.bf16.msra.mxu0 0
    %195 = vmatprep.mubr.bf16.mxu0 0
    %196 = vmatmul.mubr.bf16.gmra.mxu0 %v76
    %v197 = vpop.f32.mrf.mxu0
    %v198 = vadd.f32 %v113, %v197
    %v199 = vpop.f32.mrf.mxu0
    %v200 = vpop.f32.mrf.mxu0
    %v201 = vadd.f32 %v113, %v200
    %v202 = vpop.f32.mrf.mxu0
    %203 = vmatprep.mubr.bf16.mxu0 0
    %204 = vmatmul.mubr.bf16.gmra.mxu0 %v77
    %v205 = vpop.f32.mrf.mxu0
    %v206 = vadd.f32 %v113, %v205
    %v207 = vpop.f32.mrf.mxu0
    %v208 = vpop.f32.mrf.mxu0
    %v209 = vadd.f32 %v113, %v208
    %v210 = vpop.f32.mrf.mxu0
    %211 = vmatprep.mubr.bf16.mxu0 0
    %212 = vmatmul.mubr.bf16.gmra.mxu0 %v78
    %v213 = vpop.f32.mrf.mxu0
    %v214 = vadd.f32 %v113, %v213
    %v215 = vpop.f32.mrf.mxu0
    %v216 = vpop.f32.mrf.mxu0
    %v217 = vadd.f32 %v113, %v216
    %v218 = vpop.f32.mrf.mxu0
    %219 = vmatprep.mubr.bf16.mxu0 0
    %220 = vmatmul.mubr.bf16.gmra.mxu0 %v79
    %v221 = vpop.f32.mrf.mxu0
    %v222 = vadd.f32 %v113, %v221
    %v223 = vpop.f32.mrf.mxu0
    %v224 = vpop.f32.mrf.mxu0
    %v225 = vadd.f32 %v113, %v224
    %v226 = vpop.f32.mrf.mxu0
    %227 = vmatprep.mubr.bf16.mxu0 0
    %228 = vmatmul.mubr.bf16.gmra.mxu0 %v80
    %v229 = vpop.f32.mrf.mxu0
    %v230 = vadd.f32 %v113, %v229
    %v231 = vpop.f32.mrf.mxu0
    %v232 = vpop.f32.mrf.mxu0
    %v233 = vadd.f32 %v113, %v232
    %v234 = vpop.f32.mrf.mxu0
    %235 = vmatprep.mubr.bf16.mxu0 0
    %236 = vmatmul.mubr.bf16.gmra.mxu0 %v81
    %v237 = vpop.f32.mrf.mxu0
    %v238 = vadd.f32 %v113, %v237
    %v239 = vpop.f32.mrf.mxu0
    %v240 = vpop.f32.mrf.mxu0
    %v241 = vadd.f32 %v113, %v240
    %v242 = vpop.f32.mrf.mxu0
    %243 = vmatprep.mubr.bf16.mxu0 0
    %244 = vmatmul.mubr.bf16.gmra.mxu0 %v82
    %v245 = vpop.f32.mrf.mxu0
    %v246 = vadd.f32 %v113, %v245
    %v247 = vpop.f32.mrf.mxu0
    %v248 = vpop.f32.mrf.mxu0
    %v249 = vadd.f32 %v113, %v248
    %v250 = vpop.f32.mrf.mxu0
    %251 = vmatprep.mubr.bf16.mxu0 0
    %252 = vmatmul.mubr.bf16.gmra.mxu0 %v83
    %v253 = vpop.f32.mrf.mxu0
    %v254 = vadd.f32 %v113, %v253
    %v255 = vpop.f32.mrf.mxu0
    %v256 = vpop.f32.mrf.mxu0
    %v257 = vadd.f32 %v113, %v256
    %v258 = vpop.f32.mrf.mxu0
    %259 = vmatprep.mubr.bf16.mxu0 0
    %260 = vmatmul.mubr.bf16.gmra.mxu0 %v84
    %v261 = vpop.f32.mrf.mxu0
    %v262 = vadd.f32 %v113, %v261
    %v263 = vpop.f32.mrf.mxu0
    %v264 = vpop.f32.mrf.mxu0
    %v265 = vadd.f32 %v113, %v264
    %v266 = vpop.f32.mrf.mxu0
    %267 = vmatprep.mubr.bf16.mxu0 0
    %268 = vmatmul.mubr.bf16.gmra.mxu0 %v85
    %v269 = vpop.f32.mrf.mxu0
    %v270 = vadd.f32 %v113, %v269
    %v271 = vpop.f32.mrf.mxu0
    %v272 = vpop.f32.mrf.mxu0
    %v273 = vadd.f32 %v113, %v272
    %v274 = vpop.f32.mrf.mxu0
    %275 = vmatprep.mubr.bf16.mxu0 0
    %276 = vmatmul.mubr.bf16.gmra.mxu0 %v86
    %v277 = vpop.f32.mrf.mxu0
    %v278 = vadd.f32 %v113, %v277
    %v279 = vpop.f32.mrf.mxu0
    %v280 = vpop.f32.mrf.mxu0
    %v281 = vadd.f32 %v113, %v280
    %v282 = vpop.f32.mrf.mxu0
    %283 = vmatprep.mubr.bf16.mxu0 0
    %284 = vmatmul.mubr.bf16.gmra.mxu0 %v87
    %v285 = vpop.f32.mrf.mxu0
    %v286 = vadd.f32 %v113, %v285
    %v287 = vpop.f32.mrf.mxu0
    %v288 = vpop.f32.mrf.mxu0
    %v289 = vadd.f32 %v113, %v288
    %v290 = vpop.f32.mrf.mxu0
    %291 = vmatprep.mubr.bf16.mxu0 0
    %292 = vmatmul.mubr.bf16.gmra.mxu0 %v88
    %v293 = vpop.f32.mrf.mxu0
    %v294 = vadd.f32 %v113, %v293
    %v295 = vpop.f32.mrf.mxu0
    %v296 = vpop.f32.mrf.mxu0
    %v297 = vadd.f32 %v113, %v296
    %v298 = vpop.f32.mrf.mxu0
    %299 = vmatprep.mubr.bf16.mxu0 0
    %300 = vmatmul.mubr.bf16.gmra.mxu0 %v89
    %v301 = vpop.f32.mrf.mxu0
    %v302 = vadd.f32 %v113, %v301
    %v303 = vpop.f32.mrf.mxu0
    %v304 = vpop.f32.mrf.mxu0
    %v305 = vadd.f32 %v113, %v304
    %v306 = vpop.f32.mrf.mxu0
    %307 = vmatprep.mubr.bf16.mxu0 0
    %308 = vmatmul.mubr.bf16.gmra.mxu0 %v90
    %v309 = vpop.f32.mrf.mxu0
    %v310 = vadd.f32 %v113, %v309
    %v311 = vpop.f32.mrf.mxu0
    %v312 = vpop.f32.mrf.mxu0
    %v313 = vadd.f32 %v113, %v312
    %v314 = vpop.f32.mrf.mxu0
    %315 = vmatprep.mubr.bf16.mxu0 0
    %316 = vmatmul.mubr.bf16.gmra.mxu0 %v91
    %v317 = vpop.f32.mrf.mxu0
    %v318 = vadd.f32 %v113, %v317
    %v319 = vpop.f32.mrf.mxu0
    %v320 = vpop.f32.mrf.mxu0
    %v321 = vadd.f32 %v113, %v320
    %v322 = vpop.f32.mrf.mxu0
    %323 = vdwg.mxu0
    %324 = vst [vmem:[#allocation7] sm:$0xff] %v198
    %325 = vst [vmem:[#allocation7 + $0x8] sm:$0xff] %v201
    %326 = vst [vmem:[#allocation7 + $0x10] sm:$0xff] %v206
    %327 = vst [vmem:[#allocation7 + $0x18] sm:$0xff] %v209
    %328 = vst [vmem:[#allocation7 + $0x20] sm:$0xff] %v214
    %329 = vst [vmem:[#allocation7 + $0x28] sm:$0xff] %v217
    %330 = vst [vmem:[#allocation7 + $0x30] sm:$0xff] %v222
    %331 = vst [vmem:[#allocation7 + $0x38] sm:$0xff] %v225
    %332 = vst [vmem:[#allocation7 + $0x40] sm:$0xff] %v230
    %333 = vst [vmem:[#allocation7 + $0x48] sm:$0xff] %v233
    %334 = vst [vmem:[#allocation7 + $0x50] sm:$0xff] %v238
    %335 = vst [vmem:[#allocation7 + $0x58] sm:$0xff] %v241
    %336 = vst [vmem:[#allocation7 + $0x60] sm:$0xff] %v246
    %337 = vst [vmem:[#allocation7 + $0x68] sm:$0xff] %v249
    %338 = vst [vmem:[#allocation7 + $0x70] sm:$0xff] %v254
    %339 = vst [vmem:[#allocation7 + $0x78] sm:$0xff] %v257
    %340 = vst [vmem:[#allocation7 + $0x80] sm:$0xff] %v262
    %341 = vst [vmem:[#allocation7 + $0x88] sm:$0xff] %v265
    %342 = vst [vmem:[#allocation7 + $0x90] sm:$0xff] %v270
    %343 = vst [vmem:[#allocation7 + $0x98] sm:$0xff] %v273
    %344 = vst [vmem:[#allocation7 + $0xa0] sm:$0xff] %v278
    %345 = vst [vmem:[#allocation7 + $0xa8] sm:$0xff] %v281
    %346 = vst [vmem:[#allocation7 + $0xb0] sm:$0xff] %v286
    %347 = vst [vmem:[#allocation7 + $0xb8] sm:$0xff] %v289
    %348 = vst [vmem:[#allocation7 + $0xc0] sm:$0xff] %v294
    %349 = vst [vmem:[#allocation7 + $0xc8] sm:$0xff] %v297
    %350 = vst [vmem:[#allocation7 + $0xd0] sm:$0xff] %v302
    %351 = vst [vmem:[#allocation7 + $0xd8] sm:$0xff] %v305
    %352 = vst [vmem:[#allocation7 + $0xe0] sm:$0xff] %v310
    %353 = vst [vmem:[#allocation7 + $0xe8] sm:$0xff] %v313
    %354 = vst [vmem:[#allocation7 + $0xf0] sm:$0xff] %v318
    %355 = vst [vmem:[#allocation7 + $0xf8] sm:$0xff] %v321
    // Predicated region
    $region22: #{ycomb_forward.1} parent=1 // pred_check
      _
    $region23: #{ycomb_forward.1} parent=1 // pred_check_branch
      %357 = sbr.rel (0) target = $region25
    $region24: #{ycomb_forward.1} parent=1 // pred_region
      %s359 = ssub.s32 4096, 4096
      %360 = vsyncadd [#allocation4], %s359
      %s361 = sshll.u32 [#allocation7], 4
      %s362 = int_to_ptr.vmem [resolvable:$true] %s361
      %367 = dma.vmem_to_hbm [thread:$0]  %s362, 4096, %s3, [#allocation4], 128, 128, 8
    $region25: #{ycomb_forward.1} parent=1 // pred_fallthru
      _
    // Predicated region
    $region26: #{ycomb_forward.1} parent=1 // pred_check
      _
    $region27: #{ycomb_forward.1} parent=1 // pred_check_branch
      %369 = sbr.rel (0) target = $region29
    $region28: #{ycomb_forward.1} parent=1 // pred_region
      %370 = dma.done [#allocation4], 4096
    $region29: #{ycomb_forward.1} parent=1 // pred_fallthru
      _
    %371 = vsyncpa [#allocation3], 1
    %372 = vsyncpa [#allocation6], 1
    %373 = vsyncpa [#allocation4], 1

</llo_original>
